<compile_context>
chip_gen: v7x
topology: tpu7x:2x2x1
jax: 0.10.0
libtpu: 0.0.40
codegen_flags: <defaults>
</compile_context>

<pallas_src>
import functools

import jax
import jax.numpy as jnp
from jax.experimental import pallas as pl
from jax.experimental.pallas import tpu as pltpu

_BLOCK_BYTE_BUDGET = 4 * 1024 * 1024   # ~4 MiB per input block per buffer

_ARBITRARY = getattr(pltpu, "ARBITRARY", "arbitrary")
_CORE_PARALLEL = getattr(pltpu, "CORE_PARALLEL", getattr(pltpu, "PARALLEL", "parallel"))


def _tensorcores_per_device() -> int:
    """2 on v7x (2 TensorCores/chip), 1 on v5e/v6e.  Conservative default: 1."""
    try:
        dev = jax.devices()[0]
        if dev.platform != "tpu":
            return 1
        kind = str(getattr(dev, "device_kind", "")).lower()
        if "v7" in kind:
            return 2
    except Exception:
        pass
    return 1


def _mse_sum_kernel(o_ref, t_ref, out_ref, acc_ref, *,
                    block_rows, valid_rows, steps_per_slice, sliced, any_ragged):
    """Per-slice accumulate sum((o - t)^2); single cross-lane reduce at the end."""
    if sliced:
        c = pl.program_id(0)   # TensorCore slice (CORE_PARALLEL)
        i = pl.program_id(1)   # reduction step within the slice
    else:
        c = 0
        i = pl.program_id(0)

    @pl.when(i == 0)
    def _init():
        acc_ref[...] = jnp.zeros_like(acc_ref)

    d = o_ref[...].astype(jnp.float32) - t_ref[...].astype(jnp.float32)
    sq = d * d

    if any_ragged:
        # Only boundary / phantom blocks pay for the masking ops; fully-valid
        # blocks take the cheap branch below.  Phantom blocks (clamped
        # index_map) have start_row >= valid_rows, so every row is zeroed.
        start_row = (c * steps_per_slice + i) * block_rows
        needs_mask = start_row + block_rows > valid_rows

        @pl.when(needs_mask)
        def _masked_add():
            row_ids = jax.lax.broadcasted_iota(jnp.int32, sq.shape, 0) + start_row
            acc_ref[...] += jnp.where(row_ids < valid_rows, sq, 0.0)

        @pl.when(jnp.logical_not(needs_mask))
        def _plain_add():
            acc_ref[...] += sq
    else:
        acc_ref[...] += sq   # pure VPU elementwise accumulation

    @pl.when(i == steps_per_slice - 1)
    def _finalize():
        out_ref[...] = jnp.sum(acc_ref[...]).reshape(out_ref.shape)


def _mse_sum_pallas(flat_o, flat_t, n_elems):
    """sum((o - t)^2) over a flat, multiple-of-128-length prefix via Pallas."""
    # Widest lane count that divides n_elems (lane-dense, unmasked vector loads).
    if n_elems % 512 == 0:
        lanes = 512
    elif n_elems % 256 == 0:
        lanes = 256
    else:
        lanes = 128
    rows = n_elems // lanes
    o2 = flat_o.reshape(rows, lanes)
    t2 = flat_t.reshape(rows, lanes)

    itemsize_o = jnp.dtype(flat_o.dtype).itemsize
    itemsize_t = jnp.dtype(flat_t.dtype).itemsize
    # Sublane tile for the narrowest dtype: 8 (f32), 16 (bf16), 32 (int8/fp8).
    sublane_tile = max(8, 32 // max(1, min(itemsize_o, itemsize_t)))

    # Byte-budgeted block sizing keyed to the *larger* input dtype so per-step
    # DMA time is constant regardless of dtype mix.
    target_rows = _BLOCK_BYTE_BUDGET // (lanes * max(itemsize_o, itemsize_t))
    target_rows = max(sublane_tile, (target_rows // sublane_tile) * sublane_tile)
    block_rows = rows if rows <= target_rows else target_rows

    num_blocks = pl.cdiv(rows, block_rows)

    # Dual-TC split only when it buys bandwidth (v7x) and there is enough work.
    num_slices = _tensorcores_per_device()
    if num_blocks < num_slices:
        num_slices = 1
    sliced = num_slices > 1

    steps_per_slice = pl.cdiv(num_blocks, num_slices)
    last_block = num_blocks - 1
    # True iff any block (partial last block or phantom block from the slice
    # split) extends past the real data and therefore needs in-kernel masking.
    any_ragged = num_slices * steps_per_slice * block_rows > rows

    kernel = functools.partial(
        _mse_sum_kernel,
        block_rows=block_rows,
        valid_rows=rows,
        steps_per_slice=steps_per_slice,
        sliced=sliced,
        any_ragged=any_ragged,
    )

    # 2 buffers per input + f32 accumulator; raise the scoped VMEM limit so
    # v5e's 16 MiB default doesn't shrink the pipeline (physical VMEM >= 64 MiB
    # per TensorCore on every target generation).
    block_elems = block_rows * lanes
    vmem_need = 2 * block_elems * (itemsize_o + itemsize_t) + 4 * block_elems
    vmem_limit = int(max(32 * 1024 * 1024, vmem_need + (4 << 20)))

    if sliced:
        grid = (num_slices, steps_per_slice)

        def in_map(c, i):
            # Clamp so phantom logical blocks still DMA in-bounds data; their
            # contribution is zeroed by the in-kernel row mask.
            return (jnp.minimum(c * steps_per_slice + i, last_block), 0)

        def out_map(c, i):
            return (c, 0, 0)

        out_shape = jax.ShapeDtypeStruct((num_slices, 1, 1), jnp.float32)
        out_spec = pl.BlockSpec((1, 1, 1), out_map)
        semantics = (_CORE_PARALLEL, _ARBITRARY)
    else:
        grid = (num_blocks,)

        def in_map(i):
            return (i, 0)

        def out_map(i):
            return (0, 0)

        out_shape = jax.ShapeDtypeStruct((1, 1), jnp.float32)
        out_spec = pl.BlockSpec((1, 1), out_map)
        semantics = (_ARBITRARY,)

    partials = pl.pallas_call(
        kernel,
        out_shape=out_shape,
        grid_spec=pltpu.PrefetchScalarGridSpec(
            num_scalar_prefetch=0,
            grid=grid,
            in_specs=[
                pl.BlockSpec((block_rows, lanes), in_map),
                pl.BlockSpec((block_rows, lanes), in_map),
            ],
            out_specs=out_spec,
            scratch_shapes=[pltpu.VMEM((block_rows, lanes), jnp.float32)],
        ),
        compiler_params=pltpu.CompilerParams(
            dimension_semantics=semantics,
            vmem_limit_bytes=vmem_limit,
        ),
    )(o2, t2)

    return jnp.sum(partials)


def masked_mse_loss(output, target):
    """Equivalent of MaskedMSELoss.forward: mean((output - target) ** 2)."""
    assert output.shape == target.shape, "output/target shapes must match"
    n = int(output.size)
    assert n > 0, "inputs must be non-empty"

    flat_o = output.reshape(-1)   # native dtype; no wrapper-side upcast or pad
    flat_t = target.reshape(-1)

    n_main = (n // 128) * 128     # multiple-of-128 prefix handled by the kernel
    total = jnp.float32(0.0)

    if n_main > 0:
        o_main = flat_o if n_main == n else flat_o[:n_main]
        t_main = flat_t if n_main == n else flat_t[:n_main]
        total = total + _mse_sum_pallas(o_main, t_main, n_main)

    if n_main < n:
        # <128-element ragged tail: trivial scalar work in plain JAX instead of
        # a full jnp.pad HBM copy of both inputs.
        to = flat_o[n_main:].astype(jnp.float32)
        tt = flat_t[n_main:].astype(jnp.float32)
        total = total + jnp.sum((to - tt) ** 2)

    return total / jnp.float32(n)


if __name__ == "__main__":
    key = jax.random.PRNGKey(0)
    k_out, k_tgt = jax.random.split(key)

    # Small NCHW-shaped example consistent with typical usage of the loss.
    x_shape = (2, 4, 16, 16)
    output = jax.random.normal(k_out, x_shape, dtype=jnp.float32)
    target = jax.random.normal(k_tgt, x_shape, dtype=jnp.float32)

    loss = masked_mse_loss(output, target)
    loss = jax.block_until_ready(loss)

    # Reference check in plain JAX (same semantics as torch ((o-t)**2).mean()).
    ref = jnp.mean((output - target) ** 2)
    assert jnp.allclose(loss, ref, rtol=1e-6, atol=1e-6), (loss, ref)

    print("KERNEL_OK")
</pallas_src>

<mosaic_0001>
module attributes {stable_mosaic.version = 11 : i64} {
  func.func @_mse_sum_kernel(%arg0: i32, %arg1: memref<4x512xf32, #tpu.memory_space<vmem>>, %arg2: memref<4x512xf32, #tpu.memory_space<vmem>>, %arg3: memref<1x1xf32, #tpu.memory_space<vmem>>, %arg4: memref<4x512xf32, #tpu.memory_space<vmem>>) attributes {dimension_semantics = [#tpu.dimension_semantics<arbitrary>], iteration_bounds = array<i64: 1>, scalar_prefetch = 0 : i64, scratch_operands = 1 : i64, tpu.core_type = #tpu.core_type<tc>, window_params = [{transform_indices = @transform_0, window_bounds = array<i64: 4, 512>}, {transform_indices = @transform_1, window_bounds = array<i64: 4, 512>}, {pipeline_mode = #tpu.pipeline_mode<synchronous>, transform_indices = @transform_2, window_bounds = array<i64: 1, 1>}]} {
    %c0_i32 = arith.constant 0 : i32
    %0 = arith.cmpi eq, %arg0, %c0_i32 : i32
    %1 = arith.extui %0 : i1 to i32
    %c0_i32_0 = arith.constant 0 : i32
    %2 = arith.cmpi ne, %1, %c0_i32_0 : i32
    scf.if %2 {
      %cst = arith.constant 0.000000e+00 : f32
      %13 = vector.broadcast %cst : f32 to vector<4x512xf32>
      %c0_10 = arith.constant 0 : index
      %c0_11 = arith.constant 0 : index
      %14 = vector.load %arg4[%c0_10, %c0_11] : memref<4x512xf32, #tpu.memory_space<vmem>>, vector<4x512xf32>
      tpu.vector_store %arg4[%c0_10, %c0_11], %13 {strides = array<i32>} : memref<4x512xf32, #tpu.memory_space<vmem>>, vector<4x512xf32>,
    } else {
    }
    %c0 = arith.constant 0 : index
    %c0_1 = arith.constant 0 : index
    %3 = vector.load %arg1[%c0, %c0_1] : memref<4x512xf32, #tpu.memory_space<vmem>>, vector<4x512xf32>
    %c0_2 = arith.constant 0 : index
    %c0_3 = arith.constant 0 : index
    %4 = vector.load %arg2[%c0_2, %c0_3] : memref<4x512xf32, #tpu.memory_space<vmem>>, vector<4x512xf32>
    %5 = arith.subf %3, %4 : vector<4x512xf32>
    %6 = arith.mulf %5, %5 : vector<4x512xf32>
    %c0_4 = arith.constant 0 : index
    %c0_5 = arith.constant 0 : index
    %7 = vector.load %arg4[%c0_4, %c0_5] : memref<4x512xf32, #tpu.memory_space<vmem>>, vector<4x512xf32>
    %8 = arith.addf %7, %6 : vector<4x512xf32>
    %c0_6 = arith.constant 0 : index
    %c0_7 = arith.constant 0 : index
    %9 = vector.load %arg4[%c0_6, %c0_7] : memref<4x512xf32, #tpu.memory_space<vmem>>, vector<4x512xf32>
    tpu.vector_store %arg4[%c0_6, %c0_7], %8 {strides = array<i32>} : memref<4x512xf32, #tpu.memory_space<vmem>>, vector<4x512xf32>,
    %c0_i32_8 = arith.constant 0 : i32
    %10 = arith.cmpi eq, %arg0, %c0_i32_8 : i32
    %11 = arith.extui %10 : i1 to i32
    %c0_i32_9 = arith.constant 0 : i32
    %12 = arith.cmpi ne, %11, %c0_i32_9 : i32
    scf.if %12 {
      %c0_10 = arith.constant 0 : index
      %c0_11 = arith.constant 0 : index
      %13 = vector.load %arg4[%c0_10, %c0_11] : memref<4x512xf32, #tpu.memory_space<vmem>>, vector<4x512xf32>
      %14 = vector.shape_cast %13 : vector<4x512xf32> to vector<1x4x512xf32>
      %cst = arith.constant dense<0.000000e+00> : vector<1xf32>
      %15 = vector.multi_reduction <add>, %14, %cst [1, 2] : vector<1x4x512xf32> to vector<1xf32>
      %16 = vector.shape_cast %15 : vector<1xf32> to vector<1x1x1xf32>
      %17 = vector.extract %16[0, 0, 0] : f32 from vector<1x1x1xf32>
      %18 = vector.broadcast %17 : f32 to vector<1x1xf32>
      %c0_12 = arith.constant 0 : index
      %c0_13 = arith.constant 0 : index
      %19 = vector.load %arg3[%c0_12, %c0_13] : memref<1x1xf32, #tpu.memory_space<vmem>>, vector<1x1xf32>
      tpu.vector_store %arg3[%c0_12, %c0_13], %18 {strides = array<i32>} : memref<1x1xf32, #tpu.memory_space<vmem>>, vector<1x1xf32>,
    } else {
    }
    return
  }
  func.func @transform_0(%arg0: i32) -> (i32, i32) {
    %c0_i32 = arith.constant 0 : i32
    %c0_i32_0 = arith.constant 0 : i32
    return %arg0, %c0_i32 : i32, i32
  }
  func.func @transform_1(%arg0: i32) -> (i32, i32) {
    %c0_i32 = arith.constant 0 : i32
    %c0_i32_0 = arith.constant 0 : i32
    return %arg0, %c0_i32 : i32, i32
  }
  func.func @transform_2(%arg0: i32) -> (i32, i32) {
    %c0_i32 = arith.constant 0 : i32
    %c0_i32_0 = arith.constant 0 : i32
    %c0_i32_1 = arith.constant 0 : i32
    return %c0_i32, %c0_i32_0 : i32, i32
  }
}

</mosaic_0001>

<llo_original>
// kernel: tpu_custom_call.1
$region0: #{tpu_custom_call.1}
  #allocation0 [shape = 'u32[]', space=smem, size = 0x4, offset = 0x4, fixed_abs, tag = 'smem constant byte address 0x4 - core index']
  #allocation1 [shape = 'u32[144,128]{1,0:T(1,128)}', space=vmem, size = 0x12000, scoped, tag = 'internal scratch']
  #allocation2 [shape = 'f32[4,512]{1,0:T(4,128)}', space=vmem, size = 0x2000, scoped, tag = 'scratch operand']
  %s0 = inlined_call_operand.hbm [shape: f32[4,512], index: 0, kind: input, shape index: {}]
  %s1 = inlined_call_operand.hbm [shape: f32[4,512], index: 1, kind: input, shape index: {}]
  %s2 = inlined_call_operand.hbm [shape: f32[1,1], index: 2, kind: output, shape index: {}]
  %s3 = sld [smem:[#allocation0]]
  $region34: #{tpu_custom_call.1} parent=0
    _
  %s5 = ssub.s32 1, %s3
  %s6 = scalar_select 0, %s5, %s3
  $region1: #{tpu_custom_call.1} parent=0
    #allocation3 [shape = 'u8[8192]{0}', space=vmem, size = 0x2000, scoped, tag = 'input window, operand 0, single buffered']
    #allocation4 [shape = 's32[1]{0}', space=sflag, size = 0x4, scoped, tag = 'scoped memory for tpu_custom_call.1']
    #allocation5 [shape = 's32[1]{0}', space=sflag, size = 0x4, scoped, tag = 'scoped memory for tpu_custom_call.1']
    #allocation6 [shape = 'u8[8192]{0}', space=vmem, size = 0x2000, scoped, tag = 'input window, operand 1, single buffered']
    #allocation7 [shape = 's32[1]{0}', space=sflag, size = 0x4, scoped, tag = 'scoped memory for tpu_custom_call.1']
    #allocation8 [shape = 'u8[512]{0}', space=vmem, size = 0x400, scoped, tag = 'output window, operand 0, single buffered']
    %7 = vsyncpa [#allocation4], 0
    %8 = vsyncpa [#allocation7], 0
    %9 = vsyncpa [#allocation5], 0
    // Predicated region
    $region2: #{tpu_custom_call.1} parent=1 // pred_check
      _
    $region3: #{tpu_custom_call.1} parent=1 // pred_check_branch
      %11 = sbr.rel (0) target = $region5
    $region4: #{tpu_custom_call.1} parent=1 // pred_region
      %s13 = ssub.s32 256, 256
      %14 = vsyncadd [#allocation4], %s13
      %s16 = sshll.u32 [#allocation3], 4
      %s17 = int_to_ptr.vmem [resolvable:$true] %s16
      %19 = dma.hbm_to_vmem [thread:$0]  %s0, 256, %s17, [#allocation4]
    $region5: #{tpu_custom_call.1} parent=1 // pred_fallthru
      _
    // Predicated region
    $region6: #{tpu_custom_call.1} parent=1 // pred_check
      _
    $region7: #{tpu_custom_call.1} parent=1 // pred_check_branch
      %21 = sbr.rel (0) target = $region9
    $region8: #{tpu_custom_call.1} parent=1 // pred_region
      %s23 = ssub.s32 256, 256
      %24 = vsyncadd [#allocation7], %s23
      %s26 = sshll.u32 [#allocation6], 4
      %s27 = int_to_ptr.vmem [resolvable:$true] %s26
      %29 = dma.hbm_to_vmem [thread:$0]  %s1, 256, %s27, [#allocation7]
    $region9: #{tpu_custom_call.1} parent=1 // pred_fallthru
      _
    // Predicated region
    $region10: #{tpu_custom_call.1} parent=1 // pred_check
      _
    $region11: #{tpu_custom_call.1} parent=1 // pred_check_branch
      %31 = sbr.rel (0) target = $region13
    $region12: #{tpu_custom_call.1} parent=1 // pred_region
      %32 = dma.done [#allocation4], 256
    $region13: #{tpu_custom_call.1} parent=1 // pred_fallthru
      _
    // Predicated region
    $region14: #{tpu_custom_call.1} parent=1 // pred_check
      _
    $region15: #{tpu_custom_call.1} parent=1 // pred_check_branch
      %34 = sbr.rel (0) target = $region17
    $region16: #{tpu_custom_call.1} parent=1 // pred_region
      %35 = dma.done [#allocation7], 256
    $region17: #{tpu_custom_call.1} parent=1 // pred_fallthru
      _
    %p36 = scmp.eq.s32.totalorder 0, 0
    // Predicated region
    $region18: #{tpu_custom_call.1} parent=1 // pred_check
      %p37 = pneg %p36
    $region19: #{tpu_custom_call.1} parent=1 // pred_check_branch
      %39 = sbr.rel (%p37) target = $region21
    $region20: #{tpu_custom_call.1} parent=1 // pred_region
      %40 = vst [vmem:[#allocation2] sm:$0xff] 0.0
      %41 = vst [vmem:[#allocation2 + $0x8] sm:$0xff] 0.0
    $region21: #{tpu_custom_call.1} parent=1 // pred_fallthru
      _
    %v42 = vld [vmem:[#allocation3] sm:$0xff]
    %v43 = vld [vmem:[#allocation3 + $0x8] sm:$0xff]
    %v44 = vld [vmem:[#allocation6] sm:$0xff]
    %v45 = vld [vmem:[#allocation6 + $0x8] sm:$0xff]
    %v46 = vsub.f32 %v42, %v44
    %v47 = vsub.f32 %v43, %v45
    %v48 = vmul.f32 %v46, %v46
    %v49 = vmul.f32 %v47, %v47
    %v50 = vld [vmem:[#allocation2] sm:$0xff]
    %v51 = vld [vmem:[#allocation2 + $0x8] sm:$0xff]
    %v52 = vadd.f32 %v50, %v48
    %v53 = vadd.f32 %v51, %v49
    %54 = vst [vmem:[#allocation2] sm:$0xff] %v52
    %55 = vst [vmem:[#allocation2 + $0x8] sm:$0xff] %v53
    // Predicated region
    $region22: #{tpu_custom_call.1} parent=1 // pred_check
      %p56 = pneg %p36
    $region23: #{tpu_custom_call.1} parent=1 // pred_check_branch
      %58 = sbr.rel (%p56) target = $region25
    $region24: #{tpu_custom_call.1} parent=1 // pred_region
      %v59 = vld [vmem:[#allocation2] sm:$0xff]
      %v60 = vld [vmem:[#allocation2 + $0x8] sm:$0xff]
      %v63 = vcombine.high %v59, %v59
      %v64 = vcombine.high %v60, %v60
      %vm67 = vcmask 1043456
      %v68 = vsel %vm67, %v59, 0.0
      %v69 = vsel %vm67, %v63, 0.0
      %v70 = vadd.f32 %v68, %v69
      %v71 = vsel %vm67, %v60, 0.0
      %v72 = vadd.f32 %v70, %v71
      %v73 = vsel %vm67, %v64, 0.0
      %v74 = vadd.f32 %v72, %v73
      %75 = vadd.xlane.f32.xlu0 %v74
      %v76 = vpop.xlane.xlu0 %75
      %v77 = vrot.slane %v76, 4
      %v78 = vadd.f32 %v76, %v77
      %v79 = vrot.slane %v78, 2
      %v80 = vadd.f32 %v78, %v79
      %v81 = vrot.slane %v80, 1
      %v82 = vadd.f32 %v80, %v81
      %s83 = vtos %v82
      %v84 = vstv %s83
      %vm85 = vcmask 0
      %86 = vst.msk [vmem:[#allocation8] sm:$0x1] %vm85, %v84
    $region25: #{tpu_custom_call.1} parent=1 // pred_fallthru
      _
    // Predicated region
    $region26: #{tpu_custom_call.1} parent=1 // pred_check
      _
    $region27: #{tpu_custom_call.1} parent=1 // pred_check_branch
      %88 = sbr.rel (0) target = $region29
    $region28: #{tpu_custom_call.1} parent=1 // pred_region
      %s90 = ssub.s32 16, 16
      %91 = vsyncadd [#allocation5], %s90
      %s93 = sshll.u32 [#allocation8], 4
      %s94 = int_to_ptr.vmem [resolvable:$true] %s93
      %96 = dma.vmem_to_hbm [thread:$0]  %s94, 16, %s2, [#allocation5]
    $region29: #{tpu_custom_call.1} parent=1 // pred_fallthru
      _
    // Predicated region
    $region30: #{tpu_custom_call.1} parent=1 // pred_check
      _
    $region31: #{tpu_custom_call.1} parent=1 // pred_check_branch
      %98 = sbr.rel (0) target = $region33
    $region32: #{tpu_custom_call.1} parent=1 // pred_region
      %99 = dma.done [#allocation5], 16
    $region33: #{tpu_custom_call.1} parent=1 // pred_fallthru
      _
    %100 = vsyncpa [#allocation4], 1
    %101 = vsyncpa [#allocation7], 1
    %102 = vsyncpa [#allocation5], 1

</llo_original>
